<compile_context>
chip_gen: v7x
topology: tpu7x:2x2x1
jax: 0.10.0
libtpu: 0.0.40
codegen_flags: <defaults>
</compile_context>

<pallas_src>
import jax
import jax.numpy as jnp
from jax.experimental import pallas as pl
from jax.experimental.pallas import tpu as pltpu


N_IN = 4        # CartPole-style state dim
N_OUT = 2       # number of actions
N_PAD = 128     # lane-dense output width


def qnetwork_kernel(x_ref, w1_ref, w2_ref, b2_ref, o_ref):
    # x_ref : [TB, 5]   bf16  (column 4 is 1.0 -> folds b1 into w1)
    # w1_ref: [5, H]    bf16  (row 4 holds b1)
    # w2_ref: [H, 128]  bf16  (columns >= 2 are zero padding -> lane-dense out)
    # b2_ref: [1, 128]  f32   (columns >= 2 zero)
    # o_ref : [TB, 128] f32
    h = jnp.dot(x_ref[...], w1_ref[...], preferred_element_type=jnp.float32)
    h = jnp.maximum(h, 0.0)                                   # ReLU in f32 (VPU)
    y = jnp.dot(h.astype(jnp.bfloat16), w2_ref[...],
                preferred_element_type=jnp.float32)
    o_ref[...] = y + b2_ref[...]                              # bias add in f32


def prepare_params(w1, b1, w2, b2):
    """Repack PyTorch-layout params once (call per weight update, not per forward).

    w1: [H, 4], b1: [H], w2: [2, H], b2: [2]  ->  (w1_aug, w2_pad, b2_pad)
    """
    H = w1.shape[0]
    # Fold b1 into layer-1 weights (pairs with the ones column appended to x).
    w1_aug = jnp.concatenate(
        [w1.T, b1.reshape(1, H)], axis=0).astype(jnp.bfloat16)            # [5, H]
    # Lane-dense padded head: columns >= 2 are zero, sliced off after the call.
    w2_pad = jnp.zeros((H, N_PAD), jnp.bfloat16).at[:, :N_OUT].set(
        w2.T.astype(jnp.bfloat16))                                        # [H, 128]
    b2_pad = jnp.zeros((1, N_PAD), jnp.float32).at[:, :N_OUT].set(
        b2.astype(jnp.float32))                                           # [1, 128]
    return w1_aug, w2_pad, b2_pad


def qnetwork_apply(prepared, x, *, block_b=1024):
    """Forward pass with pre-packed params. x: [B, 4] f32 -> [B, 2] f32."""
    w1_aug, w2_pad, b2_pad = prepared
    B = x.shape[0]
    H = w1_aug.shape[1]
    k_aug = x.shape[1] + 1       # 4 features + ones column

    x_aug = jnp.concatenate(
        [x, jnp.ones((B, 1), x.dtype)], axis=1).astype(jnp.bfloat16)      # [B, 5]

    if B <= block_b:
        # Single-block path: no grid, no pipelining — everything sits in VMEM.
        out = pl.pallas_call(
            qnetwork_kernel,
            out_shape=jax.ShapeDtypeStruct((B, N_PAD), jnp.float32),
            in_specs=[pl.BlockSpec(memory_space=pltpu.MemorySpace.VMEM)] * 4,
            out_specs=pl.BlockSpec(memory_space=pltpu.MemorySpace.VMEM),
        )(x_aug, w1_aug, w2_pad, b2_pad)
        return out[:, :N_OUT]

    # Tiled path for large batches: weights stay resident, batch axis is
    # "parallel" so v7x's two TensorCores split it.
    b_pad = pl.cdiv(B, block_b) * block_b
    if b_pad != B:
        x_aug = jnp.pad(x_aug, ((0, b_pad - B), (0, 0)))
    out = pl.pallas_call(
        qnetwork_kernel,
        out_shape=jax.ShapeDtypeStruct((b_pad, N_PAD), jnp.float32),
        grid=(b_pad // block_b,),
        in_specs=[
            pl.BlockSpec((block_b, k_aug), lambda i: (i, 0)),
            pl.BlockSpec((k_aug, H), lambda i: (0, 0)),
            pl.BlockSpec((H, N_PAD), lambda i: (0, 0)),
            pl.BlockSpec((1, N_PAD), lambda i: (0, 0)),
        ],
        out_specs=pl.BlockSpec((block_b, N_PAD), lambda i: (i, 0)),
        compiler_params=pltpu.CompilerParams(
            dimension_semantics=("parallel",)),
    )(x_aug, w1_aug, w2_pad, b2_pad)
    return out[:B, :N_OUT]


def qnetwork_forward(x, w1, b1, w2, b2, *, block_b=1024):
    """Convenience wrapper taking raw PyTorch-layout params."""
    return qnetwork_apply(prepare_params(w1, b1, w2, b2), x, block_b=block_b)


def init_params(key, num_hidden=128):
    """Deterministic init mimicking PyTorch nn.Linear default (uniform +/-1/sqrt(fan_in))."""
    k1, k2, k3, k4 = jax.random.split(key, 4)
    bound1 = 1.0 / jnp.sqrt(float(N_IN))
    bound2 = 1.0 / jnp.sqrt(float(num_hidden))
    w1 = jax.random.uniform(k1, (num_hidden, N_IN), jnp.float32, -bound1, bound1)
    b1 = jax.random.uniform(k2, (num_hidden,), jnp.float32, -bound1, bound1)
    w2 = jax.random.uniform(k3, (N_OUT, num_hidden), jnp.float32, -bound2, bound2)
    b2 = jax.random.uniform(k4, (N_OUT,), jnp.float32, -bound2, bound2)
    return w1, b1, w2, b2


if __name__ == "__main__":
    key = jax.random.PRNGKey(0)
    k_param, k_x, k_x2 = jax.random.split(key, 3)

    num_hidden = 128
    batch = 8                      # small batch of 4-dim CartPole-style states

    w1, b1, w2, b2 = init_params(k_param, num_hidden)
    prepared = prepare_params(w1, b1, w2, b2)   # packed once, reused for all calls

    # ---- small batch: grid-free single-block path --------------------------
    x = jax.random.normal(k_x, (batch, N_IN), jnp.float32)
    out = jax.block_until_ready(qnetwork_apply(prepared, x))
    ref = jnp.maximum(x @ w1.T + b1, 0.0) @ w2.T + b2
    assert out.shape == (batch, N_OUT)
    # bf16 matmul operands (f32 accumulation) -> compare vs f32 ref with loose tol.
    assert jnp.allclose(out, ref, atol=1e-1, rtol=5e-2)

    # ---- large batch: tiled "parallel" grid path ---------------------------
    big_batch = 1500               # not a multiple of the tile -> exercises padding
    xb = jax.random.normal(k_x2, (big_batch, N_IN), jnp.float32)
    outb = jax.block_until_ready(qnetwork_forward(xb, w1, b1, w2, b2))
    refb = jnp.maximum(xb @ w1.T + b1, 0.0) @ w2.T + b2
    assert outb.shape == (big_batch, N_OUT)
    assert jnp.allclose(outb, refb, atol=1e-1, rtol=5e-2)

    print("KERNEL_OK")
</pallas_src>

<mosaic_0001>
module attributes {stable_mosaic.version = 11 : i64} {
  func.func @qnetwork_kernel(%arg0: memref<8x5xbf16, #tpu.memory_space<vmem>>, %arg1: memref<5x128xbf16, #tpu.memory_space<vmem>>, %arg2: memref<128x128xbf16, #tpu.memory_space<vmem>>, %arg3: memref<1x128xf32, #tpu.memory_space<vmem>>, %arg4: memref<8x128xf32, #tpu.memory_space<vmem>>) attributes {dimension_semantics = [], scalar_prefetch = 0 : i64, scratch_operands = 0 : i64, tpu.core_type = #tpu.core_type<tc>} {
    %c0 = arith.constant 0 : index
    %c0_0 = arith.constant 0 : index
    %0 = vector.load %arg0[%c0, %c0_0] : memref<8x5xbf16, #tpu.memory_space<vmem>>, vector<8x5xbf16>
    %c0_1 = arith.constant 0 : index
    %c0_2 = arith.constant 0 : index
    %1 = vector.load %arg1[%c0_1, %c0_2] : memref<5x128xbf16, #tpu.memory_space<vmem>>, vector<5x128xbf16>
    %cst = arith.constant dense<0.000000e+00> : vector<8x128xf32>
    %2 = tpu.matmul %0, %1, %cst {dimension_numbers = #tpu.dot_dimension_numbers<[1], [0], [0], [1], [0, 0, 1, 1], [], []>} : vector<8x5xbf16>, vector<5x128xbf16>, vector<8x128xf32> -> vector<8x128xf32>
    %cst_3 = arith.constant 0.000000e+00 : f32
    %3 = vector.broadcast %cst_3 : f32 to vector<8x128xf32>
    %4 = arith.maximumf %2, %3 : vector<8x128xf32>
    %5 = arith.truncf %4 : vector<8x128xf32> to vector<8x128xbf16>
    %c0_4 = arith.constant 0 : index
    %c0_5 = arith.constant 0 : index
    %6 = vector.load %arg2[%c0_4, %c0_5] : memref<128x128xbf16, #tpu.memory_space<vmem>>, vector<128x128xbf16>
    %cst_6 = arith.constant dense<0.000000e+00> : vector<8x128xf32>
    %7 = tpu.matmul %5, %6, %cst_6 {dimension_numbers = #tpu.dot_dimension_numbers<[1], [0], [0], [1], [0, 0, 1, 1], [], []>} : vector<8x128xbf16>, vector<128x128xbf16>, vector<8x128xf32> -> vector<8x128xf32>
    %c0_7 = arith.constant 0 : index
    %c0_8 = arith.constant 0 : index
    %8 = vector.load %arg3[%c0_7, %c0_8] : memref<1x128xf32, #tpu.memory_space<vmem>>, vector<1x128xf32>
    %9 = vector.broadcast %8 : vector<1x128xf32> to vector<8x128xf32>
    %10 = arith.addf %7, %9 : vector<8x128xf32>
    %c0_9 = arith.constant 0 : index
    %c0_10 = arith.constant 0 : index
    %11 = vector.load %arg4[%c0_9, %c0_10] : memref<8x128xf32, #tpu.memory_space<vmem>>, vector<8x128xf32>
    tpu.vector_store %arg4[%c0_9, %c0_10], %10 {strides = array<i32>} : memref<8x128xf32, #tpu.memory_space<vmem>>, vector<8x128xf32>,
    return
  }
}

</mosaic_0001>

<llo_original>
// kernel: tpu_custom_call.1
$region0: #{tpu_custom_call.1}
  #allocation0 [shape = 'u32[]', space=smem, size = 0x4, offset = 0x4, fixed_abs, tag = 'smem constant byte address 0x4 - core index']
  #allocation1 [shape = 'u32[144,128]{1,0:T(1,128)}', space=vmem, size = 0x12000, scoped, tag = 'internal scratch']
  %s0 = inlined_call_operand.hbm [shape: bf16[8,5], index: 0, kind: input, shape index: {}]
  %s1 = inlined_call_operand.hbm [shape: bf16[5,128], index: 1, kind: input, shape index: {}]
  %s2 = inlined_call_operand.hbm [shape: bf16[128,128], index: 2, kind: input, shape index: {}]
  %s3 = inlined_call_operand.vmem [shape: f32[1,128], index: 3, kind: input, shape index: {}]
  %s4 = inlined_call_operand.hbm [shape: f32[8,128], index: 4, kind: output, shape index: {}]
  %s5 = sld [smem:[#allocation0]]
  $region38: #{tpu_custom_call.1} parent=0
    _
  %s7 = ssub.s32 1, %s5
  %s8 = scalar_select 0, %s7, %s5
  $region1: #{tpu_custom_call.1} parent=0
    #allocation2 [shape = 'u8[2048]{0}', space=vmem, size = 0x800, scoped, tag = 'input window, operand 0, single buffered']
    #allocation3 [shape = 's32[1]{0}', space=sflag, size = 0x4, scoped, tag = 'scoped memory for tpu_custom_call.1']
    #allocation4 [shape = 's32[1]{0}', space=sflag, size = 0x4, scoped, tag = 'scoped memory for tpu_custom_call.1']
    #allocation5 [shape = 'u8[2048]{0}', space=vmem, size = 0x800, scoped, tag = 'input window, operand 1, single buffered']
    #allocation6 [shape = 's32[1]{0}', space=sflag, size = 0x4, scoped, tag = 'scoped memory for tpu_custom_call.1']
    #allocation7 [shape = 'u8[32768]{0}', space=vmem, size = 0x8000, scoped, tag = 'input window, operand 2, single buffered']
    #allocation8 [shape = 'u8[4096]{0}', space=vmem, size = 0x1000, scoped, tag = 'output window, operand 0, single buffered']
    %9 = vsyncpa [#allocation3], 0
    %10 = vsyncpa [#allocation6], 0
    %11 = vsyncpa [#allocation4], 0
    // Predicated region
    $region2: #{tpu_custom_call.1} parent=1 // pred_check
      _
    $region3: #{tpu_custom_call.1} parent=1 // pred_check_branch
      %13 = sbr.rel (0) target = $region5
    $region4: #{tpu_custom_call.1} parent=1 // pred_region
      %s15 = ssub.s32 64, 64
      %16 = vsyncadd [#allocation3], %s15
      %s18 = sshll.u32 [#allocation2], 4
      %s19 = int_to_ptr.vmem [resolvable:$true] %s18
      %21 = dma.hbm_to_vmem [thread:$0]  %s0, 64, %s19, [#allocation3]
    $region5: #{tpu_custom_call.1} parent=1 // pred_fallthru
      _
    // Predicated region
    $region6: #{tpu_custom_call.1} parent=1 // pred_check
      _
    $region7: #{tpu_custom_call.1} parent=1 // pred_check_branch
      %23 = sbr.rel (0) target = $region9
    $region8: #{tpu_custom_call.1} parent=1 // pred_region
      %s25 = ssub.s32 64, 64
      %26 = vsyncadd [#allocation6], %s25
      %s28 = sshll.u32 [#allocation5], 4
      %s29 = int_to_ptr.vmem [resolvable:$true] %s28
      %31 = dma.hbm_to_vmem [thread:$0]  %s1, 64, %s29, [#allocation6]
    $region9: #{tpu_custom_call.1} parent=1 // pred_fallthru
      _
    // Predicated region
    $region10: #{tpu_custom_call.1} parent=1 // pred_check
      _
    $region11: #{tpu_custom_call.1} parent=1 // pred_check_branch
      %33 = sbr.rel (0) target = $region13
    $region12: #{tpu_custom_call.1} parent=1 // pred_region
      %s35 = ssub.s32 1024, 1024
      %36 = vsyncadd [#allocation6], %s35
      %s37 = sshll.u32 [#allocation7], 4
      %s38 = int_to_ptr.vmem [resolvable:$true] %s37
      %43 = dma.hbm_to_vmem [thread:$0]  %s2, 1024, %s38, [#allocation6], 64, 64, 4
    $region13: #{tpu_custom_call.1} parent=1 // pred_fallthru
      _
    // Predicated region
    $region14: #{tpu_custom_call.1} parent=1 // pred_check
      _
    $region15: #{tpu_custom_call.1} parent=1 // pred_check_branch
      %45 = sbr.rel (0) target = $region17
    $region16: #{tpu_custom_call.1} parent=1 // pred_region
      _
    $region17: #{tpu_custom_call.1} parent=1 // pred_fallthru
      _
    // Predicated region
    $region18: #{tpu_custom_call.1} parent=1 // pred_check
      _
    $region19: #{tpu_custom_call.1} parent=1 // pred_check_branch
      %47 = sbr.rel (0) target = $region21
    $region20: #{tpu_custom_call.1} parent=1 // pred_region
      %48 = dma.done [#allocation3], 64
    $region21: #{tpu_custom_call.1} parent=1 // pred_fallthru
      _
    // Predicated region
    $region22: #{tpu_custom_call.1} parent=1 // pred_check
      _
    $region23: #{tpu_custom_call.1} parent=1 // pred_check_branch
      %50 = sbr.rel (0) target = $region25
    $region24: #{tpu_custom_call.1} parent=1 // pred_region
      %51 = dma.done [#allocation6], 64
    $region25: #{tpu_custom_call.1} parent=1 // pred_fallthru
      _
    // Predicated region
    $region26: #{tpu_custom_call.1} parent=1 // pred_check
      _
    $region27: #{tpu_custom_call.1} parent=1 // pred_check_branch
      %53 = sbr.rel (0) target = $region29
    $region28: #{tpu_custom_call.1} parent=1 // pred_region
      %54 = dma.done [#allocation6], 1024
    $region29: #{tpu_custom_call.1} parent=1 // pred_fallthru
      _
    %v56 = vld [vmem:[#allocation2] sm:$0xf]
    %v57 = vld [vmem:[#allocation5] sm:$0x7]
    %vm58 = vcmask 39936
    %v60 = vsel %vm58, %v56, 0
    %vm62 = vcmask 1041408
    %vm63 = vcmask 1042432
    %v64 = vsel %vm62, 4294967295, 65535
    %v65 = vsel %vm63, %v64, 0
    %v67 = vand.u32 %v57, %v65
    %69 = vmatprep.subr.bf16.mxu0 0
    %70 = vmatpush1.bf16.msra.mxu0 %v67
    %71 = vmatprep.subr.bf16.mxu0 0
    %72 = vmatpush1.bf16.msra.mxu0 0
    %73 = vmatprep.subr.bf16.mxu0 0
    %74 = vmatpush1.bf16.msra.mxu0 0
    %75 = vmatprep.subr.bf16.mxu0 0
    %76 = vmatpush1.bf16.msra.mxu0 0
    %77 = vmatprep.subr.bf16.mxu0 0
    %78 = vmatpush1.bf16.msra.mxu0 0
    %79 = vmatprep.subr.bf16.mxu0 0
    %80 = vmatpush1.bf16.msra.mxu0 0
    %81 = vmatprep.subr.bf16.mxu0 0
    %82 = vmatpush1.bf16.msra.mxu0 0
    %83 = vmatprep.subr.bf16.mxu0 0
    %84 = vmatpush1.bf16.msra.mxu0 0
    %85 = vmatprep.subr.bf16.mxu0 0
    %86 = vmatpush1.bf16.msra.mxu0 0
    %87 = vmatprep.subr.bf16.mxu0 0
    %88 = vmatpush1.bf16.msra.mxu0 0
    %89 = vmatprep.subr.bf16.mxu0 0
    %90 = vmatpush1.bf16.msra.mxu0 0
    %91 = vmatprep.subr.bf16.mxu0 0
    %92 = vmatpush1.bf16.msra.mxu0 0
    %93 = vmatprep.subr.bf16.mxu0 0
    %94 = vmatpush1.bf16.msra.mxu0 0
    %95 = vmatprep.subr.bf16.mxu0 0
    %96 = vmatpush1.bf16.msra.mxu0 0
    %97 = vmatprep.subr.bf16.mxu0 0
    %98 = vmatpush1.bf16.msra.mxu0 0
    %99 = vmatprep.subr.bf16.mxu0 0
    %100 = vmatpush1.bf16.msra.mxu0 0
    %101 = vmatprep.mubr.bf16.mxu0 0
    %102 = vmatmul.mubr.bf16.gmra.mrb[0].mxu0 %v60
    %v103 = vpop.f32.mrb[0].mxu0
    %v104 = vadd.f32 0.0, %v103
    %v105 = vpop.f32.mrb[0].mxu0
    %v106 = vpop.f32.mrb[0].mxu0
    %v107 = vpop.f32.mrb[0].mxu0
    %108 = vdwg.mxu0
    %v109 = vmax.f32 %v104, 0.0
    %v110 = vpack.c.bf16 %v109, %v109
    %v111 = vld [vmem:[#allocation7] sm:$0xf]
    %v112 = vld [vmem:[#allocation7 + $0x4] sm:$0xf]
    %v113 = vld [vmem:[#allocation7 + $0x8] sm:$0xf]
    %v114 = vld [vmem:[#allocation7 + $0xc] sm:$0xf]
    %v115 = vld [vmem:[#allocation7 + $0x10] sm:$0xf]
    %v116 = vld [vmem:[#allocation7 + $0x14] sm:$0xf]
    %v117 = vld [vmem:[#allocation7 + $0x18] sm:$0xf]
    %v118 = vld [vmem:[#allocation7 + $0x1c] sm:$0xf]
    %v119 = vld [vmem:[#allocation7 + $0x20] sm:$0xf]
    %v120 = vld [vmem:[#allocation7 + $0x24] sm:$0xf]
    %v121 = vld [vmem:[#allocation7 + $0x28] sm:$0xf]
    %v122 = vld [vmem:[#allocation7 + $0x2c] sm:$0xf]
    %v123 = vld [vmem:[#allocation7 + $0x30] sm:$0xf]
    %v124 = vld [vmem:[#allocation7 + $0x34] sm:$0xf]
    %v125 = vld [vmem:[#allocation7 + $0x38] sm:$0xf]
    %v126 = vld [vmem:[#allocation7 + $0x3c] sm:$0xf]
    %v127 = vld [vmem:[%s3] sm:$0x1]
    %v129 = vlaneseq
    %v130 = vshrl.u32 %v129, 7
    %v131 = vsub.s32 0, %v130
    %v132 = vrot.slane %v127, %v131
    %v150 = vunpack.c.l.b16 %v111
    %v151 = vunpack.c.l.b16 %v112
    %v152 = vunpack.c.l.b16 %v113
    %v153 = vunpack.c.l.b16 %v114
    %v154 = vunpack.c.l.b16 %v115
    %v155 = vunpack.c.l.b16 %v116
    %v156 = vunpack.c.l.b16 %v117
    %v157 = vunpack.c.l.b16 %v118
    %v158 = vunpack.c.l.b16 %v119
    %v159 = vunpack.c.l.b16 %v120
    %v160 = vunpack.c.l.b16 %v121
    %v161 = vunpack.c.l.b16 %v122
    %v162 = vunpack.c.l.b16 %v123
    %v163 = vunpack.c.l.b16 %v124
    %v164 = vunpack.c.l.b16 %v125
    %v165 = vunpack.c.l.b16 %v126
    %v166 = vpack.c.b16 %v151, %v150
    %v167 = vpack.c.b16 %v153, %v152
    %v168 = vpack.c.b16 %v155, %v154
    %v169 = vpack.c.b16 %v157, %v156
    %v170 = vpack.c.b16 %v159, %v158
    %v171 = vpack.c.b16 %v161, %v160
    %v172 = vpack.c.b16 %v163, %v162
    %v173 = vpack.c.b16 %v165, %v164
    %182 = vmatprep.subr.bf16.mxu0 0
    %183 = vmatpush1.bf16.msra.mxu0 %v166
    %184 = vmatprep.subr.bf16.mxu0 0
    %185 = vmatpush1.bf16.msra.mxu0 %v167
    %186 = vmatprep.subr.bf16.mxu0 0
    %187 = vmatpush1.bf16.msra.mxu0 %v168
    %188 = vmatprep.subr.bf16.mxu0 0
    %189 = vmatpush1.bf16.msra.mxu0 %v169
    %190 = vmatprep.subr.bf16.mxu0 0
    %191 = vmatpush1.bf16.msra.mxu0 %v170
    %192 = vmatprep.subr.bf16.mxu0 0
    %193 = vmatpush1.bf16.msra.mxu0 %v171
    %194 = vmatprep.subr.bf16.mxu0 0
    %195 = vmatpush1.bf16.msra.mxu0 %v172
    %196 = vmatprep.subr.bf16.mxu0 0
    %197 = vmatpush1.bf16.msra.mxu0 %v173
    %198 = vmatprep.subr.bf16.mxu0 0
    %199 = vmatpush1.bf16.msra.mxu0 0
    %200 = vmatprep.subr.bf16.mxu0 0
    %201 = vmatpush1.bf16.msra.mxu0 0
    %202 = vmatprep.subr.bf16.mxu0 0
    %203 = vmatpush1.bf16.msra.mxu0 0
    %204 = vmatprep.subr.bf16.mxu0 0
    %205 = vmatpush1.bf16.msra.mxu0 0
    %206 = vmatprep.subr.bf16.mxu0 0
    %207 = vmatpush1.bf16.msra.mxu0 0
    %208 = vmatprep.subr.bf16.mxu0 0
    %209 = vmatpush1.bf16.msra.mxu0 0
    %210 = vmatprep.subr.bf16.mxu0 0
    %211 = vmatpush1.bf16.msra.mxu0 0
    %212 = vmatprep.subr.bf16.mxu0 0
    %213 = vmatpush1.bf16.msra.mxu0 0
    %214 = vmatprep.mubr.bf16.mxu0 0
    %215 = vmatmul.mubr.bf16.gmra.mrb[0].mxu0 %v110
    %v216 = vpop.f32.mrb[0].mxu0
    %v217 = vadd.f32 %v132, %v216
    %v218 = vpop.f32.mrb[0].mxu0
    %v219 = vpop.f32.mrb[0].mxu0
    %v220 = vpop.f32.mrb[0].mxu0
    %221 = vdwg.mxu0
    %222 = vst [vmem:[#allocation8] sm:$0xff] %v217
    // Predicated region
    $region30: #{tpu_custom_call.1} parent=1 // pred_check
      _
    $region31: #{tpu_custom_call.1} parent=1 // pred_check_branch
      %224 = sbr.rel (0) target = $region33
    $region32: #{tpu_custom_call.1} parent=1 // pred_region
      %s226 = ssub.s32 128, 128
      %227 = vsyncadd [#allocation4], %s226
      %s229 = sshll.u32 [#allocation8], 4
      %s230 = int_to_ptr.vmem [resolvable:$true] %s229
      %232 = dma.vmem_to_hbm [thread:$0]  %s230, 128, %s4, [#allocation4]
    $region33: #{tpu_custom_call.1} parent=1 // pred_fallthru
      _
    // Predicated region
    $region34: #{tpu_custom_call.1} parent=1 // pred_check
      _
    $region35: #{tpu_custom_call.1} parent=1 // pred_check_branch
      %234 = sbr.rel (0) target = $region37
    $region36: #{tpu_custom_call.1} parent=1 // pred_region
      %235 = dma.done [#allocation4], 128
    $region37: #{tpu_custom_call.1} parent=1 // pred_fallthru
      _
    %236 = vsyncpa [#allocation3], 1
    %237 = vsyncpa [#allocation6], 1
    %238 = vsyncpa [#allocation4], 1

</llo_original>
